<compile_context>
chip_gen: v7x
topology: tpu7x:2x2x1
jax: 0.10.0
libtpu: 0.0.40
codegen_flags: <defaults>
</compile_context>

<pallas_src>
import functools
import math

import jax
import jax.numpy as jnp
from jax.experimental import pallas as pl
from jax.experimental.pallas import tpu as pltpu

_LANES = 128
_DEFAULT_TILE_ROWS = 2048    # DMA granule: 1 MiB (pack=4) / 2 MiB (pack=8) f32 per step
_DEFAULT_CHUNK_ROWS = 128    # compute granule: bounds one-hot live range to <=24 vregs
_MIN_PALLAS_TOKENS = 8192    # below this a plain XLA gather beats kernel dispatch


def _round_up(x: int, m: int) -> int:
    return (x + m - 1) // m * m


def _build_fixed_table(c_in: int, d_model: int) -> jnp.ndarray:
    """Deterministic sinusoidal table, identical to the PyTorch FixedEmbedding.__init__."""
    assert d_model % 2 == 0, "d_model must be even (as in the PyTorch module)"
    position = jnp.arange(c_in, dtype=jnp.float32)[:, None]                    # (c_in, 1)
    div_term = jnp.exp(
        jnp.arange(0, d_model, 2, dtype=jnp.float32) * -(math.log(10000.0) / d_model)
    )                                                                          # (d_model/2,)
    args = position * div_term                                                 # (c_in, d/2)
    w = jnp.zeros((c_in, d_model), dtype=jnp.float32)
    w = w.at[:, 0::2].set(jnp.sin(args))
    w = w.at[:, 1::2].set(jnp.cos(args))
    return w


def _build_block_diag_table(table: jnp.ndarray, pack: int) -> jnp.ndarray:
    """(c_in, d) -> block-diagonal (pack*c_in, pack*d).

    Row p*c_in+v holds table[v] in output lanes [p*d, (p+1)*d), zeros elsewhere, so a
    single (rows, pack*c_in) one-hot matmul emits `pack` tokens per lane-dense row."""
    c_in, d = table.shape
    if pack == 1:
        return table
    eye = jnp.eye(pack, dtype=table.dtype)
    return jnp.einsum("pq,vj->pvqj", eye, table).reshape(pack * c_in, pack * d)


def _choose_pack(d_model: int) -> int:
    """Tokens packed per lane-dense output row (128 lanes on v5e, 256 on v6e/v7x)."""
    if d_model > _LANES or _LANES % d_model != 0:
        # TODO(synk): d_model not dividing 128 falls back to lane-masked (<128) stores.
        return 1
    pack = _LANES // d_model
    try:
        kind = jax.devices()[0].device_kind.lower()
    except Exception:  # pragma: no cover - defensive; fall back to 128-lane rows
        kind = ""
    # v6e / v7x: 256-wide MXU + longer unmasked store bursts -> 256-lane rows.
    if ("v6" in kind or "v7" in kind) and (2 * _LANES) % d_model == 0:
        pack *= 2
    return pack


def _fixed_embedding_kernel(idx_ref, wbig_ref, out_ref, *, pack, chunk_rows, num_chunks):
    # idx_ref : (tile_rows, pack)          int32 -- token ids already offset by p*c_in
    # wbig_ref: (pack*c_in, pack*d_model)  f32   -- block-diagonal sinusoidal table
    # out_ref : (tile_rows, pack*d_model)        -- lane-dense packed embeddings
    k = wbig_ref.shape[0]

    def emit_chunk(start):
        idx = idx_ref[pl.ds(start, chunk_rows), :]                          # (chunk, pack)
        lanes = jax.lax.broadcasted_iota(jnp.int32, (chunk_rows, k), 1)
        onehot = jnp.zeros((chunk_rows, k), dtype=wbig_ref.dtype)
        for p in range(pack):  # small static unroll (pack <= 8): cheap VPU compares
            onehot = onehot + (lanes == idx[:, p:p + 1]).astype(wbig_ref.dtype)
        out_ref[pl.ds(start, chunk_rows), :] = jnp.dot(
            onehot, wbig_ref[...], preferred_element_type=jnp.float32
        ).astype(out_ref.dtype)

    if num_chunks == 1:
        emit_chunk(0)
    else:
        # Chunked inner loop bounds vreg live ranges so the large DMA tile never spills.
        def body(c, carry):
            emit_chunk(pl.multiple_of(c * chunk_rows, chunk_rows))
            return carry

        jax.lax.fori_loop(0, num_chunks, body, 0)


def fixed_embedding(
    x: jnp.ndarray,
    table: jnp.ndarray,
    *,
    tile_rows: int = _DEFAULT_TILE_ROWS,
    chunk_rows: int = _DEFAULT_CHUNK_ROWS,
    min_pallas_tokens: int = _MIN_PALLAS_TOKENS,
    out_dtype=None,
    pack: int | None = None,
) -> jnp.ndarray:
    """Pallas forward of FixedEmbedding: returns table[x] with shape x.shape + (d_model,)."""
    c_in, d_model = table.shape
    out_dtype = table.dtype if out_dtype is None else out_dtype
    orig_shape = x.shape
    # Clamp so out-of-range ids behave like jnp.take (torch.nn.Embedding would raise).
    idx_flat = jnp.clip(x.reshape(-1).astype(jnp.int32), 0, c_in - 1)          # (N,)
    n = idx_flat.shape[0]

    # Small-N fast path: launch + per-step overhead dominates; plain gather is faster.
    if n < min_pallas_tokens:
        out = jnp.take(table, idx_flat, axis=0).astype(out_dtype)
        return out.reshape(*orig_shape, d_model)

    if pack is None:
        pack = _choose_pack(d_model)
    wbig = _build_block_diag_table(table, pack)

    # Pad only up to a multiple of `pack` (at most pack-1 ids) so rows is exact.
    n_pad = _round_up(n, pack)
    if n_pad != n:
        idx_flat = jnp.pad(idx_flat, (0, n_pad - n))
    rows = n_pad // pack

    # Fold the per-column block offsets (+ p*c_in) in here so the kernel is pure compares.
    idx2d = idx_flat.reshape(rows, pack) + jnp.arange(pack, dtype=jnp.int32) * c_in

    # Geometry: chunk = compute granule (multiple of 8), tile = DMA granule (mult of chunk).
    chunk_rows = _round_up(max(8, min(chunk_rows, rows)), 8)
    tile_rows = _round_up(max(chunk_rows, min(tile_rows, rows)), chunk_rows)
    grid_len = pl.cdiv(rows, tile_rows)
    # Keep >= 2 grid steps when there is enough work so ("parallel",) can use both
    # TensorCores on v7x; harmless (one extra ~0.35 µs step) on v5e/v6e.
    if grid_len == 1 and rows > 2 * chunk_rows:
        tile_rows = _round_up(pl.cdiv(rows, 2), chunk_rows)
        grid_len = pl.cdiv(rows, tile_rows)
    num_chunks = tile_rows // chunk_rows

    kernel = functools.partial(
        _fixed_embedding_kernel, pack=pack, chunk_rows=chunk_rows, num_chunks=num_chunks
    )
    # Output is sized exactly; Pallas masks the final partial block's out-of-range rows,
    # so no post-kernel slice/copy is needed when N % pack == 0.
    out_packed = pl.pallas_call(
        kernel,
        out_shape=jax.ShapeDtypeStruct((rows, pack * d_model), out_dtype),
        grid=(grid_len,),
        in_specs=[
            pl.BlockSpec((tile_rows, pack), lambda i: (i, 0)),
            pl.BlockSpec((pack * c_in, pack * d_model), lambda i: (0, 0)),
        ],
        out_specs=pl.BlockSpec((tile_rows, pack * d_model), lambda i: (i, 0)),
        compiler_params=pltpu.CompilerParams(
            dimension_semantics=("parallel",),
            vmem_limit_bytes=32 * 1024 * 1024,
        ),
    )(idx2d, wbig)

    out = out_packed.reshape(rows * pack, d_model)   # contiguous -> free reshape
    if n_pad != n:
        # TODO(synk): only taken when N % pack != 0; the slice re-copies the output once.
        out = out[:n]
    return out.reshape(*orig_shape, d_model)


def decoder_forward(x, cross, layers, norm=None, projection=None,
                    x_mask=None, cross_mask=None):
    """Pure-JAX port of Decoder.forward.

    The layers / norm_layer / projection are externally-injected callables (none are
    defined in the spec), so there is nothing layer-specific to lower to Pallas here;
    fixed_embedding() above is the Pallas-accelerated primitive of the embedding stack
    feeding this decoder."""
    attns = []
    for layer in layers:
        x, attn = layer(x, cross, x_mask=x_mask, cross_mask=cross_mask)
        attns.append(attn)
    if norm is not None:
        x = norm(x)
    if projection is not None:
        x = projection(x)
    return x, attns


if __name__ == "__main__":
    c_in = 24        # hour-of-day style categorical vocabulary
    d_model = 32
    table = _build_fixed_table(c_in, d_model)

    key0, key1, key2 = jax.random.split(jax.random.PRNGKey(0), 3)

    # 1) Small shape consistent with the module (batch=2, seq=8), forced through the
    #    Pallas path: single tile, final (only) block is partial and masked by Pallas.
    x_small = jax.random.randint(key0, (2, 8), 0, c_in, dtype=jnp.int32)
    out_small = jax.block_until_ready(fixed_embedding(x_small, table, min_pallas_tokens=1))
    ref_small = jnp.take(table, x_small, axis=0)
    assert out_small.shape == (2, 8, d_model)
    assert jnp.allclose(out_small, ref_small, atol=1e-6), "mismatch vs reference (small)"

    # bf16 output option (halves the dominant HBM write traffic downstream).
    out_bf16 = jax.block_until_ready(
        fixed_embedding(x_small, table, min_pallas_tokens=1, out_dtype=jnp.bfloat16))
    assert out_bf16.dtype == jnp.bfloat16
    assert jnp.allclose(out_bf16.astype(jnp.float32), ref_small, atol=2e-2), \
        "mismatch vs reference (bf16)"

    # 2) Multi-grid-step path with small tiles (4-8 pipelined steps).
    x_med = jax.random.randint(key1, (2, 2048), 0, c_in, dtype=jnp.int32)
    out_med = jax.block_until_ready(
        fixed_embedding(x_med, table, min_pallas_tokens=1, tile_rows=128))
    ref_med = jnp.take(table, x_med, axis=0)
    assert jnp.allclose(out_med, ref_med, atol=1e-6), "mismatch vs reference (medium)"

    # 3) Default configuration: large DMA tiles, grid >= 2, chunked inner compute loop.
    x_big = jax.random.randint(key2, (4, 4096), 0, c_in, dtype=jnp.int32)
    out_big = jax.block_until_ready(fixed_embedding(x_big, table))
    ref_big = jnp.take(table, x_big, axis=0)
    assert out_big.shape == (4, 4096, d_model)
    assert jnp.allclose(out_big, ref_big, atol=1e-6), "mismatch vs reference (large)"

    # Decoder container smoke test (layers are externally injected in the spec; trivial
    # JAX callables stand in to check the control flow of Decoder.forward).
    layer = lambda h, cross, x_mask=None, cross_mask=None: (h + 0.5 * cross, None)
    dec_x = out_small.astype(jnp.float32)
    dec_cross = jnp.ones_like(dec_x)
    dec_out, attns = decoder_forward(dec_x, dec_cross, layers=[layer, layer])
    assert dec_out.shape == dec_x.shape and len(attns) == 2

    print("KERNEL_OK")
</pallas_src>

<mosaic_0001>
module attributes {stable_mosaic.version = 11 : i64} {
  func.func @_fixed_embedding_kernel(%arg0: i32, %arg1: memref<8x4xi32, #tpu.memory_space<vmem>>, %arg2: memref<96x128xf32, #tpu.memory_space<vmem>>, %arg3: memref<8x128xf32, #tpu.memory_space<vmem>>) attributes {dimension_semantics = [#tpu.dimension_semantics<parallel>], iteration_bounds = array<i64: 1>, scalar_prefetch = 0 : i64, scratch_operands = 0 : i64, tpu.core_type = #tpu.core_type<tc>, window_params = [{transform_indices = @transform_0, window_bounds = array<i64: 8, 4>}, {pipeline_mode = #tpu.pipeline_mode<synchronous>, transform_indices = @transform_1, window_bounds = array<i64: 96, 128>}, {transform_indices = @transform_2, window_bounds = array<i64: 8, 128>}]} {
    %c0 = arith.constant 0 : index
    %c0_0 = arith.constant 0 : index
    %0 = vector.load %arg1[%c0, %c0_0] : memref<8x4xi32, #tpu.memory_space<vmem>>, vector<8x4xi32>
    %1 = tpu.iota {dimensions = array<i32: 1>} : vector<8x96xi32>
    %cst = arith.constant 0.000000e+00 : f32
    %2 = vector.broadcast %cst : f32 to vector<8x96xf32>
    %3 = vector.extract_strided_slice %0 {offsets = [0, 0], sizes = [8, 1], strides = [1, 1]} : vector<8x4xi32> to vector<8x1xi32>
    %4 = vector.broadcast %3 : vector<8x1xi32> to vector<8x96xi32>
    %5 = arith.cmpi eq, %1, %4 : vector<8x96xi32>
    %6 = arith.extui %5 : vector<8x96xi1> to vector<8x96xi32>
    %7 = arith.sitofp %6 : vector<8x96xi32> to vector<8x96xf32>
    %8 = arith.addf %2, %7 : vector<8x96xf32>
    %9 = vector.extract_strided_slice %0 {offsets = [0, 1], sizes = [8, 1], strides = [1, 1]} : vector<8x4xi32> to vector<8x1xi32>
    %10 = vector.broadcast %9 : vector<8x1xi32> to vector<8x96xi32>
    %11 = arith.cmpi eq, %1, %10 : vector<8x96xi32>
    %12 = arith.extui %11 : vector<8x96xi1> to vector<8x96xi32>
    %13 = arith.sitofp %12 : vector<8x96xi32> to vector<8x96xf32>
    %14 = arith.addf %8, %13 : vector<8x96xf32>
    %15 = vector.extract_strided_slice %0 {offsets = [0, 2], sizes = [8, 1], strides = [1, 1]} : vector<8x4xi32> to vector<8x1xi32>
    %16 = vector.broadcast %15 : vector<8x1xi32> to vector<8x96xi32>
    %17 = arith.cmpi eq, %1, %16 : vector<8x96xi32>
    %18 = arith.extui %17 : vector<8x96xi1> to vector<8x96xi32>
    %19 = arith.sitofp %18 : vector<8x96xi32> to vector<8x96xf32>
    %20 = arith.addf %14, %19 : vector<8x96xf32>
    %21 = vector.extract_strided_slice %0 {offsets = [0, 3], sizes = [8, 1], strides = [1, 1]} : vector<8x4xi32> to vector<8x1xi32>
    %22 = vector.broadcast %21 : vector<8x1xi32> to vector<8x96xi32>
    %23 = arith.cmpi eq, %1, %22 : vector<8x96xi32>
    %24 = arith.extui %23 : vector<8x96xi1> to vector<8x96xi32>
    %25 = arith.sitofp %24 : vector<8x96xi32> to vector<8x96xf32>
    %26 = arith.addf %20, %25 : vector<8x96xf32>
    %c0_1 = arith.constant 0 : index
    %c0_2 = arith.constant 0 : index
    %27 = vector.load %arg2[%c0_1, %c0_2] : memref<96x128xf32, #tpu.memory_space<vmem>>, vector<96x128xf32>
    %cst_3 = arith.constant dense<0.000000e+00> : vector<8x128xf32>
    %28 = tpu.matmul %26, %27, %cst_3 {dimension_numbers = #tpu.dot_dimension_numbers<[1], [0], [0], [1], [0, 0, 1, 1], [], []>} : vector<8x96xf32>, vector<96x128xf32>, vector<8x128xf32> -> vector<8x128xf32>
    %c0_4 = arith.constant 0 : index
    %c0_5 = arith.constant 0 : index
    %29 = vector.load %arg3[%c0_4, %c0_5] : memref<8x128xf32, #tpu.memory_space<vmem>>, vector<8x128xf32>
    tpu.vector_store %arg3[%c0_4, %c0_5], %28 {strides = array<i32>} : memref<8x128xf32, #tpu.memory_space<vmem>>, vector<8x128xf32>,
    return
  }
  func.func @transform_0(%arg0: i32) -> (i32, i32) {
    %c0_i32 = arith.constant 0 : i32
    %c0_i32_0 = arith.constant 0 : i32
    return %arg0, %c0_i32 : i32, i32
  }
  func.func @transform_1(%arg0: i32) -> (i32, i32) {
    %c0_i32 = arith.constant 0 : i32
    %c0_i32_0 = arith.constant 0 : i32
    %c0_i32_1 = arith.constant 0 : i32
    return %c0_i32, %c0_i32_0 : i32, i32
  }
  func.func @transform_2(%arg0: i32) -> (i32, i32) {
    %c0_i32 = arith.constant 0 : i32
    %c0_i32_0 = arith.constant 0 : i32
    return %arg0, %c0_i32 : i32, i32
  }
}

</mosaic_0001>

<llo_original>
// kernel: tpu_custom_call.1
$region0: #{tpu_custom_call.1}
  #allocation0 [shape = 'u32[]', space=smem, size = 0x4, offset = 0x4, fixed_abs, tag = 'smem constant byte address 0x4 - core index']
  #allocation1 [shape = 'u32[144,128]{1,0:T(1,128)}', space=vmem, size = 0x12000, scoped, tag = 'internal scratch']
  %s0 = inlined_call_operand.hbm [shape: s32[4,4], index: 0, kind: input, shape index: {}]
  %s1 = inlined_call_operand.hbm [shape: f32[96,128], index: 1, kind: input, shape index: {}]
  %s2 = inlined_call_operand.hbm [shape: f32[4,128], index: 2, kind: output, shape index: {}]
  %s3 = sld [smem:[#allocation0]]
  $region26: #{tpu_custom_call.1} parent=0
    _
  %s5 = ssub.s32 1, %s3
  %s6 = scalar_select 0, %s5, %s3
  $region1: #{tpu_custom_call.1} parent=0
    #allocation2 [shape = 'u8[4096]{0}', space=vmem, size = 0x1000, scoped, tag = 'input window, operand 0, single buffered']
    #allocation3 [shape = 's32[1]{0}', space=sflag, size = 0x4, scoped, tag = 'scoped memory for tpu_custom_call.1']
    #allocation4 [shape = 's32[1]{0}', space=sflag, size = 0x4, scoped, tag = 'scoped memory for tpu_custom_call.1']
    #allocation5 [shape = 'u8[49152]{0}', space=vmem, size = 0xc000, scoped, tag = 'input window, operand 1, single buffered']
    #allocation6 [shape = 's32[1]{0}', space=sflag, size = 0x4, scoped, tag = 'scoped memory for tpu_custom_call.1']
    #allocation7 [shape = 'u8[4096]{0}', space=vmem, size = 0x1000, scoped, tag = 'output window, operand 0, single buffered']
    %7 = vsyncpa [#allocation3], 0
    %8 = vsyncpa [#allocation6], 0
    %9 = vsyncpa [#allocation4], 0
    // Predicated region
    $region2: #{tpu_custom_call.1} parent=1 // pred_check
      _
    $region3: #{tpu_custom_call.1} parent=1 // pred_check_branch
      %11 = sbr.rel (0) target = $region5
    $region4: #{tpu_custom_call.1} parent=1 // pred_region
      %s13 = ssub.s32 128, 64
      %14 = vsyncadd [#allocation3], %s13
      %s15 = sshll.u32 [#allocation2], 4
      %s16 = int_to_ptr.vmem [resolvable:$true] %s15
      %21 = dma.hbm_to_vmem [thread:$0]  %s0, 64, %s16, [#allocation3], 64, 64, 4
    $region5: #{tpu_custom_call.1} parent=1 // pred_fallthru
      _
    // Predicated region
    $region6: #{tpu_custom_call.1} parent=1 // pred_check
      _
    $region7: #{tpu_custom_call.1} parent=1 // pred_check_branch
      %23 = sbr.rel (0) target = $region9
    $region8: #{tpu_custom_call.1} parent=1 // pred_region
      %s25 = ssub.s32 1536, 1536
      %26 = vsyncadd [#allocation6], %s25
      %s27 = sshll.u32 [#allocation5], 4
      %s28 = int_to_ptr.vmem [resolvable:$true] %s27
      %33 = dma.hbm_to_vmem [thread:$0]  %s1, 1536, %s28, [#allocation6], 128, 128, 8
    $region9: #{tpu_custom_call.1} parent=1 // pred_fallthru
      _
    // Predicated region
    $region10: #{tpu_custom_call.1} parent=1 // pred_check
      _
    $region11: #{tpu_custom_call.1} parent=1 // pred_check_branch
      %35 = sbr.rel (0) target = $region13
    $region12: #{tpu_custom_call.1} parent=1 // pred_region
      %36 = dma.done [#allocation3], 128
    $region13: #{tpu_custom_call.1} parent=1 // pred_fallthru
      _
    // Predicated region
    $region14: #{tpu_custom_call.1} parent=1 // pred_check
      _
    $region15: #{tpu_custom_call.1} parent=1 // pred_check_branch
      %38 = sbr.rel (0) target = $region17
    $region16: #{tpu_custom_call.1} parent=1 // pred_region
      %39 = dma.done [#allocation6], 1536
    $region17: #{tpu_custom_call.1} parent=1 // pred_fallthru
      _
    %v40 = vld [vmem:[#allocation2] sm:$0xff]
    %v41 = vlaneseq
    %v42 = vand.u32 %v41, 127
    %43 = vset.pattern.permute.xlu0 0
    %44 = vperm.xlu0 %43, %v40
    %v45 = vpop.permute.xlu0 %44
    %vm46 = vcmp.eq.s32.totalorder %v42, %v45
    %v47 = vsel %vm46, 1, 0
    %v48 = vcvt.s32.f32 %v47
    %v49 = vadd.f32 %v48, 0.0
    %50 = vset.pattern.permute.xlu0 1
    %51 = vperm.xlu0 %50, %v40
    %v52 = vpop.permute.xlu0 %51
    %vm53 = vcmp.eq.s32.totalorder %v42, %v52
    %v54 = vsel %vm53, 1, 0
    %v55 = vcvt.s32.f32 %v54
    %v56 = vadd.f32 %v49, %v55
    %57 = vset.pattern.permute.xlu0 2
    %58 = vperm.xlu0 %57, %v40
    %v59 = vpop.permute.xlu0 %58
    %vm60 = vcmp.eq.s32.totalorder %v42, %v59
    %v61 = vsel %vm60, 1, 0
    %v62 = vcvt.s32.f32 %v61
    %v63 = vadd.f32 %v56, %v62
    %64 = vset.pattern.permute.xlu0 3
    %65 = vperm.xlu0 %64, %v40
    %v66 = vpop.permute.xlu0 %65
    %vm67 = vcmp.eq.s32.totalorder %v42, %v66
    %v68 = vsel %vm67, 1, 0
    %v69 = vcvt.s32.f32 %v68
    %v70 = vadd.f32 %v63, %v69
    %v71 = vld [vmem:[#allocation5] sm:$0xff]
    %v72 = vld [vmem:[#allocation5 + $0x8] sm:$0xff]
    %v73 = vld [vmem:[#allocation5 + $0x10] sm:$0xff]
    %v74 = vld [vmem:[#allocation5 + $0x18] sm:$0xff]
    %v75 = vld [vmem:[#allocation5 + $0x20] sm:$0xff]
    %v76 = vld [vmem:[#allocation5 + $0x28] sm:$0xff]
    %v77 = vld [vmem:[#allocation5 + $0x30] sm:$0xff]
    %v78 = vld [vmem:[#allocation5 + $0x38] sm:$0xff]
    %v79 = vld [vmem:[#allocation5 + $0x40] sm:$0xff]
    %v80 = vld [vmem:[#allocation5 + $0x48] sm:$0xff]
    %v81 = vld [vmem:[#allocation5 + $0x50] sm:$0xff]
    %v82 = vld [vmem:[#allocation5 + $0x58] sm:$0xff]
    %vm83 = vcmask 785408
    %v85 = vsel %vm83, %v70, 0
    %87 = vmatprep.subr.mxu0 0.0
    %88 = vmatpush1.msra.mxu0 %v71
    %89 = vmatprep.subr.mxu0 0.0
    %90 = vmatpush1.msra.mxu0 %v72
    %91 = vmatprep.subr.mxu0 0.0
    %92 = vmatpush1.msra.mxu0 %v73
    %93 = vmatprep.subr.mxu0 0.0
    %94 = vmatpush1.msra.mxu0 %v74
    %95 = vmatprep.subr.mxu0 0.0
    %96 = vmatpush1.msra.mxu0 %v75
    %97 = vmatprep.subr.mxu0 0.0
    %98 = vmatpush1.msra.mxu0 %v76
    %99 = vmatprep.subr.mxu0 0.0
    %100 = vmatpush1.msra.mxu0 %v77
    %101 = vmatprep.subr.mxu0 0.0
    %102 = vmatpush1.msra.mxu0 %v78
    %103 = vmatprep.subr.mxu0 0.0
    %104 = vmatpush1.msra.mxu0 %v79
    %105 = vmatprep.subr.mxu0 0.0
    %106 = vmatpush1.msra.mxu0 %v80
    %107 = vmatprep.subr.mxu0 0.0
    %108 = vmatpush1.msra.mxu0 %v81
    %109 = vmatprep.subr.mxu0 0.0
    %110 = vmatpush1.msra.mxu0 %v82
    %111 = vmatprep.subr.mxu0 0.0
    %112 = vmatpush1.msra.mxu0 0.0
    %113 = vmatprep.subr.mxu0 0.0
    %114 = vmatpush1.msra.mxu0 0.0
    %115 = vmatprep.subr.mxu0 0.0
    %116 = vmatpush1.msra.mxu0 0.0
    %117 = vmatprep.subr.mxu0 0.0
    %118 = vmatpush1.msra.mxu0 0.0
    %119 = vmatprep.subr.mxu0 0.0
    %120 = vmatpush1.msra.mxu0 0.0
    %121 = vmatprep.subr.mxu0 0.0
    %122 = vmatpush1.msra.mxu0 0.0
    %123 = vmatprep.subr.mxu0 0.0
    %124 = vmatpush1.msra.mxu0 0.0
    %125 = vmatprep.subr.mxu0 0.0
    %126 = vmatpush1.msra.mxu0 0.0
    %127 = vmatprep.subr.mxu0 0.0
    %128 = vmatpush1.msra.mxu0 0.0
    %129 = vmatprep.subr.mxu0 0.0
    %130 = vmatpush1.msra.mxu0 0.0
    %131 = vmatprep.subr.mxu0 0.0
    %132 = vmatpush1.msra.mxu0 0.0
    %133 = vmatprep.subr.mxu0 0.0
    %134 = vmatpush1.msra.mxu0 0.0
    %135 = vmatprep.subr.mxu0 0.0
    %136 = vmatpush1.msra.mxu0 0.0
    %137 = vmatprep.subr.mxu0 0.0
    %138 = vmatpush1.msra.mxu0 0.0
    %139 = vmatprep.subr.mxu0 0.0
    %140 = vmatpush1.msra.mxu0 0.0
    %141 = vmatprep.subr.mxu0 0.0
    %142 = vmatpush1.msra.mxu0 0.0
    %143 = vmatprep.subr.mxu0 0.0
    %144 = vmatpush1.msra.mxu0 0.0
    %145 = vmatprep.subr.mxu0 0.0
    %146 = vmatpush1.msra.mxu0 0.0
    %147 = vmatprep.subr.mxu0 0.0
    %148 = vmatpush1.msra.mxu0 0.0
    %149 = vmatprep.subr.mxu0 0.0
    %150 = vmatpush1.msra.mxu0 0.0
    %151 = vmatprep.mubr.f32.mxu0 0.0
    %152 = vmatmul.mubr.f32.gmra.mrb[0].mxu0 %v85
    %v153 = vpop.f32.mrb[0].mxu0
    %v154 = vadd.f32 0.0, %v153
    %v155 = vpop.f32.mrb[0].mxu0
    %156 = vdwg.mxu0
    %157 = vst [vmem:[#allocation7] sm:$0xff] %v154
    // Predicated region
    $region18: #{tpu_custom_call.1} parent=1 // pred_check
      _
    $region19: #{tpu_custom_call.1} parent=1 // pred_check_branch
      %159 = sbr.rel (0) target = $region21
    $region20: #{tpu_custom_call.1} parent=1 // pred_region
      %s161 = ssub.s32 128, 64
      %162 = vsyncadd [#allocation4], %s161
      %s163 = sshll.u32 [#allocation7], 4
      %s164 = int_to_ptr.vmem [resolvable:$true] %s163
      %169 = dma.vmem_to_hbm [thread:$0]  %s164, 64, %s2, [#allocation4], 64, 64, 4
    $region21: #{tpu_custom_call.1} parent=1 // pred_fallthru
      _
    // Predicated region
    $region22: #{tpu_custom_call.1} parent=1 // pred_check
      _
    $region23: #{tpu_custom_call.1} parent=1 // pred_check_branch
      %171 = sbr.rel (0) target = $region25
    $region24: #{tpu_custom_call.1} parent=1 // pred_region
      %172 = dma.done [#allocation4], 128
    $region25: #{tpu_custom_call.1} parent=1 // pred_fallthru
      _
    %173 = vsyncpa [#allocation3], 1
    %174 = vsyncpa [#allocation6], 1
    %175 = vsyncpa [#allocation4], 1

</llo_original>
